<compile_context>
chip_gen: v7x
topology: tpu7x:2x2x1
jax: 0.10.0
libtpu: 0.0.40
codegen_flags: <defaults>
</compile_context>

<pallas_src>
import jax
import jax.numpy as jnp
from jax.experimental import pallas as pl
from jax.experimental.pallas import tpu as pltpu

ALPHA = 0.2            # leaky_relu negative slope
NEG_BIG = -9.0e15      # mask value, matches the PyTorch module


def _leaky_relu(v, alpha=ALPHA):
    return jnp.where(v > 0, v, alpha * v)


def _round_up(v, m):
    return (v + m - 1) // m * m


# --------------- kernel 1: fused projection + residual + logit halves ---------------

def _proj_kernel(x_ref, wcat_ref, a1_ref, a2_ref, rbias_ref,
                 h_ref, rb_ref, wh1_ref, wh2_ref):
    dp = h_ref.shape[-1]
    # single 2*dp-wide matmul: [tq, din] @ [din, 2*dp]
    hw = jnp.dot(x_ref[...], wcat_ref[...], preferred_element_type=jnp.float32)
    h = _leaky_relu(hw[:, :dp])                                   # [tq, dp] f32
    h_ref[...] = h.astype(h_ref.dtype)                            # bf16 store
    rb_ref[...] = hw[:, dp:] + rbias_ref[...]                     # residual + bias (f32)
    # per-node attention-logit halves (computed from f32 h; hoisted out of kernel 2)
    wh1_ref[...] = jnp.dot(h, a1_ref[...], preferred_element_type=jnp.float32)
    wh2_ref[...] = jax.lax.dot_general(
        a2_ref[...], h, dimension_numbers=(((1,), (1,)), ((), ())),
        preferred_element_type=jnp.float32)                       # [1, tq]


# --------------- kernel 2: masked attention, online softmax ---------------

def _attn_kernel(wh1_ref, wh2_ref, adj_ref, hk_ref, rb_ref, out_ref, m_sc, l_sc):
    j = pl.program_id(1)

    @pl.when(j == 0)
    def _():
        m_sc[...] = jnp.full_like(m_sc, -jnp.inf)
        l_sc[...] = jnp.zeros_like(l_sc)
        out_ref[...] = jnp.zeros_like(out_ref)

    # logits from the precomputed halves: pure VPU broadcast, no per-tile matmul
    e = _leaky_relu(wh1_ref[...] + wh2_ref[...])                  # [tq, tk]
    att = jnp.where(adj_ref[...] > 0, e, NEG_BIG)                 # adj tile is int8

    # online softmax; the output tile is the VMEM-resident accumulator
    m_prev = m_sc[...]
    m_new = jnp.maximum(m_prev, jnp.max(att, axis=1, keepdims=True))
    corr = jnp.exp(m_prev - m_new)
    p = jnp.exp(att - m_new)
    l_sc[...] = corr * l_sc[...] + jnp.sum(p, axis=1, keepdims=True)
    out_ref[...] = corr * out_ref[...] + jnp.dot(
        p.astype(hk_ref.dtype), hk_ref[...],
        preferred_element_type=jnp.float32)
    m_sc[...] = m_new

    @pl.when(j == pl.num_programs(1) - 1)
    def _():
        # fold softmax denominator + L2 row-normalization into one per-row scale
        acc = out_ref[...]
        inv_l = pl.reciprocal(l_sc[...], approx=True)                     # EUP
        norm = jnp.sqrt(jnp.sum(acc * acc, axis=1, keepdims=True)) * inv_l
        scale = inv_l * pl.reciprocal(jnp.maximum(norm, 1e-12), approx=True)
        out_ref[...] = acc * scale + rb_ref[...]


# ------------------------------- wrapper -----------------------------------

def attention_layer(x, adj, weight, a, bias, w_res, b_res, *, tq=512, tk=512):
    """x:[N,Din] f32, adj:[N,N] (nonzero = edge), weight:[Din,Dout],
    a:[2*Dout,1], bias:[Dout], w_res:[Din,Dout] (pre-transposed nn.Linear weight),
    b_res:[Dout].  Returns [N,Dout] f32 (eval-mode forward)."""
    n, din = x.shape
    dout = weight.shape[1]
    f32 = jnp.float32
    bf16 = jnp.bfloat16

    dp = _round_up(dout, 128)                   # lane-dense feature width
    npad_min = _round_up(n, 128)
    tq = _round_up(min(tq, npad_min), 128)
    tk = _round_up(min(tk, npad_min), 128)
    # keep padding bounded by max(tq, tk): snap so the smaller tile divides the larger
    if tq <= tk:
        tk = (tk // tq) * tq
    else:
        tq = (tq // tk) * tk
    n_pad = _round_up(n, max(tq, tk))

    # zero-pad everything (padded key rows are masked out by adj==0, padded feature
    # columns stay exactly zero through the whole pipeline).
    # NOTE: degree-0 nodes (no edge, no self-loop) get a uniform average over n_pad
    # keys (finite NEG_BIG mask) — same convention as the torch module up to padding.
    x_p = jnp.zeros((n_pad, din), f32).at[:n, :].set(x.astype(f32))
    adj_p = jnp.zeros((n_pad, n_pad), jnp.int8).at[:n, :n].set(
        (adj > 0).astype(jnp.int8))
    w_cat = jnp.zeros((din, 2 * dp), f32)
    w_cat = w_cat.at[:, :dout].set(weight.astype(f32))
    w_cat = w_cat.at[:, dp:dp + dout].set(w_res.astype(f32))
    a1 = jnp.zeros((dp, 1), f32).at[:dout, 0].set(a[:dout, 0].astype(f32))
    a2 = jnp.zeros((1, dp), f32).at[0, :dout].set(a[dout:, 0].astype(f32))
    rbias = jnp.zeros((1, dp), f32).at[0, :dout].set((b_res + bias).astype(f32))

    # ---- kernel 1: hw = x @ [W|W_res]; h (bf16), rb (f32), wh1 [N,1], wh2 [1,N]
    h, rb, wh1, wh2 = pl.pallas_call(
        _proj_kernel,
        out_shape=(jax.ShapeDtypeStruct((n_pad, dp), bf16),
                   jax.ShapeDtypeStruct((n_pad, dp), f32),
                   jax.ShapeDtypeStruct((n_pad, 1), f32),
                   jax.ShapeDtypeStruct((1, n_pad), f32)),
        grid_spec=pltpu.PrefetchScalarGridSpec(
            num_scalar_prefetch=0,
            grid=(n_pad // tq,),
            in_specs=[
                pl.BlockSpec((tq, din), lambda i: (i, 0)),
                pl.BlockSpec((din, 2 * dp), lambda i: (0, 0)),
                pl.BlockSpec((dp, 1), lambda i: (0, 0)),
                pl.BlockSpec((1, dp), lambda i: (0, 0)),
                pl.BlockSpec((1, dp), lambda i: (0, 0)),
            ],
            out_specs=(pl.BlockSpec((tq, dp), lambda i: (i, 0)),
                       pl.BlockSpec((tq, dp), lambda i: (i, 0)),
                       pl.BlockSpec((tq, 1), lambda i: (i, 0)),
                       pl.BlockSpec((1, tq), lambda i: (0, i))),
        ),
        compiler_params=pltpu.CompilerParams(
            dimension_semantics=("parallel",),
            vmem_limit_bytes=32 * 1024 * 1024),
    )(x_p, w_cat, a1, a2, rbias)

    # ---- kernel 2: online-softmax attention over the (q_tile, k_tile) grid
    out = pl.pallas_call(
        _attn_kernel,
        out_shape=jax.ShapeDtypeStruct((n_pad, dp), f32),
        grid_spec=pltpu.PrefetchScalarGridSpec(
            num_scalar_prefetch=0,
            grid=(n_pad // tq, n_pad // tk),
            in_specs=[
                pl.BlockSpec((tq, 1), lambda i, j: (i, 0)),    # wh1 (query half)
                pl.BlockSpec((1, tk), lambda i, j: (0, j)),    # wh2 (key half)
                pl.BlockSpec((tq, tk), lambda i, j: (i, j)),   # adj tile (int8)
                pl.BlockSpec((tk, dp), lambda i, j: (j, 0)),   # h keys (bf16)
                pl.BlockSpec((tq, dp), lambda i, j: (i, 0)),   # residual + bias (f32)
            ],
            out_specs=pl.BlockSpec((tq, dp), lambda i, j: (i, 0)),
            scratch_shapes=[
                pltpu.VMEM((tq, 1), f32),     # running max
                pltpu.VMEM((tq, 1), f32),     # running sum
            ],
        ),
        compiler_params=pltpu.CompilerParams(
            dimension_semantics=("parallel", "arbitrary"),
            vmem_limit_bytes=32 * 1024 * 1024),
    )(wh1, wh2, adj_p, h, rb)

    return out[:n, :dout]


# ------------------------------ reference ----------------------------------

def reference(x, adj, weight, a, bias, w_res, b_res):
    dout = weight.shape[1]
    h = _leaky_relu(x @ weight)
    wh1 = h @ a[:dout]
    wh2 = h @ a[dout:]
    e = _leaky_relu(wh1 + wh2.T)
    att = jnp.where(adj > 0, e, NEG_BIG)
    att = jax.nn.softmax(att, axis=1)
    hp = att @ h
    hp = hp / jnp.maximum(jnp.linalg.norm(hp, axis=1, keepdims=True), 1e-12)
    hp = hp + bias
    return hp + (x @ w_res + b_res)


def xavier_uniform(key, shape, gain=1.0):
    fan_in, fan_out = shape[0], shape[1]
    limit = gain * (6.0 / (fan_in + fan_out)) ** 0.5
    return jax.random.uniform(key, shape, jnp.float32, -limit, limit)


def _make_case(key, n, din, dout):
    kx, kadj, kw, ka, kwr, kbr = jax.random.split(key, 6)
    x = jax.random.normal(kx, (n, din), jnp.float32)
    adj = (jax.random.uniform(kadj, (n, n)) > 0.5).astype(jnp.float32)
    adj = adj + jnp.eye(n, dtype=jnp.float32)      # self-loops
    gain = 1.414
    weight = xavier_uniform(kw, (din, dout), gain)      # self.weight
    a = xavier_uniform(ka, (2 * dout, 1), gain)         # self.a
    bias = jnp.zeros((dout,), jnp.float32)              # self.bias (zeros)
    lim = (1.0 / din) ** 0.5
    w_res = jax.random.uniform(kwr, (din, dout), jnp.float32, -lim, lim)
    b_res = jax.random.uniform(kbr, (dout,), jnp.float32, -lim, lim)
    return x, adj, weight, a, bias, w_res, b_res


if __name__ == "__main__":
    key = jax.random.PRNGKey(0)
    k1, k2 = jax.random.split(key)

    # bf16 storage of h (per perf review) + EUP approx reciprocals -> compare
    # against the f32 reference with a correspondingly relaxed tolerance.
    TOL = 1e-2

    # case 1: original toy shape (single-tile grid, default tq/tk clamp to 128)
    args1 = _make_case(k1, 16, 8, 32)
    out1 = attention_layer(*args1)
    jax.block_until_ready(out1)
    ref1 = reference(*args1)
    assert out1.shape == (16, 32)
    err1 = jnp.max(jnp.abs(out1 - ref1))
    assert jnp.allclose(out1, ref1, atol=TOL, rtol=TOL), f"case1 max err {err1}"

    # case 2: exercises the multi-tile online-softmax path (3x3 grid)
    args2 = _make_case(k2, 300, 24, 48)
    out2 = attention_layer(*args2, tq=128, tk=128)
    jax.block_until_ready(out2)
    ref2 = reference(*args2)
    assert out2.shape == (300, 48)
    err2 = jnp.max(jnp.abs(out2 - ref2))
    assert jnp.allclose(out2, ref2, atol=TOL, rtol=TOL), f"case2 max err {err2}"

    print("KERNEL_OK")
</pallas_src>

<mosaic_0001>
module attributes {stable_mosaic.version = 11 : i64} {
  func.func @_proj_kernel(%arg0: i32, %arg1: memref<128x8xf32, #tpu.memory_space<vmem>>, %arg2: memref<8x256xf32, #tpu.memory_space<vmem>>, %arg3: memref<128x1xf32, #tpu.memory_space<vmem>>, %arg4: memref<1x128xf32, #tpu.memory_space<vmem>>, %arg5: memref<1x128xf32, #tpu.memory_space<vmem>>, %arg6: memref<128x128xbf16, #tpu.memory_space<vmem>>, %arg7: memref<128x128xf32, #tpu.memory_space<vmem>>, %arg8: memref<128x1xf32, #tpu.memory_space<vmem>>, %arg9: memref<1x128xf32, #tpu.memory_space<vmem>>) attributes {dimension_semantics = [#tpu.dimension_semantics<parallel>], iteration_bounds = array<i64: 1>, scalar_prefetch = 0 : i64, scratch_operands = 0 : i64, tpu.core_type = #tpu.core_type<tc>, window_params = [{transform_indices = @transform_0, window_bounds = array<i64: 128, 8>}, {pipeline_mode = #tpu.pipeline_mode<synchronous>, transform_indices = @transform_1, window_bounds = array<i64: 8, 256>}, {pipeline_mode = #tpu.pipeline_mode<synchronous>, transform_indices = @transform_2, window_bounds = array<i64: 128, 1>}, {pipeline_mode = #tpu.pipeline_mode<synchronous>, transform_indices = @transform_3, window_bounds = array<i64: 1, 128>}, {pipeline_mode = #tpu.pipeline_mode<synchronous>, transform_indices = @transform_4, window_bounds = array<i64: 1, 128>}, {transform_indices = @transform_5, window_bounds = array<i64: 128, 128>}, {transform_indices = @transform_6, window_bounds = array<i64: 128, 128>}, {transform_indices = @transform_7, window_bounds = array<i64: 128, 1>}, {transform_indices = @transform_8, window_bounds = array<i64: 1, 128>}]} {
    %c0 = arith.constant 0 : index
    %c0_0 = arith.constant 0 : index
    %0 = vector.load %arg1[%c0, %c0_0] : memref<128x8xf32, #tpu.memory_space<vmem>>, vector<128x8xf32>
    %c0_1 = arith.constant 0 : index
    %c0_2 = arith.constant 0 : index
    %1 = vector.load %arg2[%c0_1, %c0_2] : memref<8x256xf32, #tpu.memory_space<vmem>>, vector<8x256xf32>
    %cst = arith.constant dense<0.000000e+00> : vector<128x256xf32>
    %2 = tpu.matmul %0, %1, %cst {dimension_numbers = #tpu.dot_dimension_numbers<[1], [0], [0], [1], [0, 0, 1, 1], [], []>} : vector<128x8xf32>, vector<8x256xf32>, vector<128x256xf32> -> vector<128x256xf32>
    %3 = vector.extract_strided_slice %2 {offsets = [0, 0], sizes = [128, 128], strides = [1, 1]} : vector<128x256xf32> to vector<128x128xf32>
    %cst_3 = arith.constant 0.000000e+00 : f32
    %4 = vector.broadcast %cst_3 : f32 to vector<128x128xf32>
    %5 = arith.cmpf ogt, %3, %4 : vector<128x128xf32>
    %cst_4 = arith.constant 2.000000e-01 : f32
    %6 = vector.broadcast %cst_4 : f32 to vector<128x128xf32>
    %7 = arith.mulf %6, %3 : vector<128x128xf32>
    %8 = arith.select %5, %3, %7 : vector<128x128xi1>, vector<128x128xf32>
    %9 = arith.truncf %8 : vector<128x128xf32> to vector<128x128xbf16>
    %c0_5 = arith.constant 0 : index
    %c0_6 = arith.constant 0 : index
    %10 = vector.load %arg6[%c0_5, %c0_6] : memref<128x128xbf16, #tpu.memory_space<vmem>>, vector<128x128xbf16>
    tpu.vector_store %arg6[%c0_5, %c0_6], %9 {strides = array<i32>} : memref<128x128xbf16, #tpu.memory_space<vmem>>, vector<128x128xbf16>,
    %11 = vector.extract_strided_slice %2 {offsets = [0, 128], sizes = [128, 128], strides = [1, 1]} : vector<128x256xf32> to vector<128x128xf32>
    %c0_7 = arith.constant 0 : index
    %c0_8 = arith.constant 0 : index
    %12 = vector.load %arg5[%c0_7, %c0_8] : memref<1x128xf32, #tpu.memory_space<vmem>>, vector<1x128xf32>
    %13 = vector.broadcast %12 : vector<1x128xf32> to vector<128x128xf32>
    %14 = arith.addf %11, %13 : vector<128x128xf32>
    %c0_9 = arith.constant 0 : index
    %c0_10 = arith.constant 0 : index
    %15 = vector.load %arg7[%c0_9, %c0_10] : memref<128x128xf32, #tpu.memory_space<vmem>>, vector<128x128xf32>
    tpu.vector_store %arg7[%c0_9, %c0_10], %14 {strides = array<i32>} : memref<128x128xf32, #tpu.memory_space<vmem>>, vector<128x128xf32>,
    %c0_11 = arith.constant 0 : index
    %c0_12 = arith.constant 0 : index
    %16 = vector.load %arg3[%c0_11, %c0_12] : memref<128x1xf32, #tpu.memory_space<vmem>>, vector<128x1xf32>
    %cst_13 = arith.constant dense<0.000000e+00> : vector<128x1xf32>
    %17 = tpu.matmul %8, %16, %cst_13 {dimension_numbers = #tpu.dot_dimension_numbers<[1], [0], [0], [1], [0, 0, 1, 1], [], []>} : vector<128x128xf32>, vector<128x1xf32>, vector<128x1xf32> -> vector<128x1xf32>
    %c0_14 = arith.constant 0 : index
    %c0_15 = arith.constant 0 : index
    %18 = vector.load %arg8[%c0_14, %c0_15] : memref<128x1xf32, #tpu.memory_space<vmem>>, vector<128x1xf32>
    tpu.vector_store %arg8[%c0_14, %c0_15], %17 {strides = array<i32>} : memref<128x1xf32, #tpu.memory_space<vmem>>, vector<128x1xf32>,
    %c0_16 = arith.constant 0 : index
    %c0_17 = arith.constant 0 : index
    %19 = vector.load %arg4[%c0_16, %c0_17] : memref<1x128xf32, #tpu.memory_space<vmem>>, vector<1x128xf32>
    %cst_18 = arith.constant dense<0.000000e+00> : vector<1x128xf32>
    %20 = tpu.matmul %19, %8, %cst_18 {dimension_numbers = #tpu.dot_dimension_numbers<[1], [1], [0], [0], [0, 0, 1, 0], [], []>} : vector<1x128xf32>, vector<128x128xf32>, vector<1x128xf32> -> vector<1x128xf32>
    %c0_19 = arith.constant 0 : index
    %c0_20 = arith.constant 0 : index
    %21 = vector.load %arg9[%c0_19, %c0_20] : memref<1x128xf32, #tpu.memory_space<vmem>>, vector<1x128xf32>
    tpu.vector_store %arg9[%c0_19, %c0_20], %20 {strides = array<i32>} : memref<1x128xf32, #tpu.memory_space<vmem>>, vector<1x128xf32>,
    return
  }
  func.func @transform_0(%arg0: i32) -> (i32, i32) {
    %c0_i32 = arith.constant 0 : i32
    %c0_i32_0 = arith.constant 0 : i32
    return %arg0, %c0_i32 : i32, i32
  }
  func.func @transform_1(%arg0: i32) -> (i32, i32) {
    %c0_i32 = arith.constant 0 : i32
    %c0_i32_0 = arith.constant 0 : i32
    %c0_i32_1 = arith.constant 0 : i32
    return %c0_i32, %c0_i32_0 : i32, i32
  }
  func.func @transform_2(%arg0: i32) -> (i32, i32) {
    %c0_i32 = arith.constant 0 : i32
    %c0_i32_0 = arith.constant 0 : i32
    %c0_i32_1 = arith.constant 0 : i32
    return %c0_i32, %c0_i32_0 : i32, i32
  }
  func.func @transform_3(%arg0: i32) -> (i32, i32) {
    %c0_i32 = arith.constant 0 : i32
    %c0_i32_0 = arith.constant 0 : i32
    %c0_i32_1 = arith.constant 0 : i32
    return %c0_i32, %c0_i32_0 : i32, i32
  }
  func.func @transform_4(%arg0: i32) -> (i32, i32) {
    %c0_i32 = arith.constant 0 : i32
    %c0_i32_0 = arith.constant 0 : i32
    %c0_i32_1 = arith.constant 0 : i32
    return %c0_i32, %c0_i32_0 : i32, i32
  }
  func.func @transform_5(%arg0: i32) -> (i32, i32) {
    %c0_i32 = arith.constant 0 : i32
    %c0_i32_0 = arith.constant 0 : i32
    return %arg0, %c0_i32 : i32, i32
  }
  func.func @transform_6(%arg0: i32) -> (i32, i32) {
    %c0_i32 = arith.constant 0 : i32
    %c0_i32_0 = arith.constant 0 : i32
    return %arg0, %c0_i32 : i32, i32
  }
  func.func @transform_7(%arg0: i32) -> (i32, i32) {
    %c0_i32 = arith.constant 0 : i32
    %c0_i32_0 = arith.constant 0 : i32
    return %arg0, %c0_i32 : i32, i32
  }
  func.func @transform_8(%arg0: i32) -> (i32, i32) {
    %c0_i32 = arith.constant 0 : i32
    %c0_i32_0 = arith.constant 0 : i32
    return %c0_i32, %arg0 : i32, i32
  }
}

</mosaic_0001>

<llo_original>
// kernel: tpu_custom_call.1
$region0: #{tpu_custom_call.1}
  #allocation0 [shape = 'u32[]', space=smem, size = 0x4, offset = 0x4, fixed_abs, tag = 'smem constant byte address 0x4 - core index']
  #allocation1 [shape = 'u32[144,128]{1,0:T(1,128)}', space=vmem, size = 0x12000, scoped, tag = 'internal scratch']
  %s0 = inlined_call_operand.vmem [shape: f32[128,8], index: 0, kind: input, shape index: {}]
  %s1 = inlined_call_operand.vmem [shape: f32[8,256], index: 1, kind: input, shape index: {}]
  %s2 = inlined_call_operand.vmem [shape: f32[128,1], index: 2, kind: input, shape index: {}]
  %s3 = inlined_call_operand.vmem [shape: f32[1,128], index: 3, kind: input, shape index: {}]
  %s4 = inlined_call_operand.vmem [shape: f32[1,128], index: 4, kind: input, shape index: {}]
  %s5 = inlined_call_operand.hbm [shape: bf16[128,128], index: 5, kind: output, shape index: {0}]
  %s6 = inlined_call_operand.hbm [shape: f32[128,128], index: 6, kind: output, shape index: {1}]
  %s7 = inlined_call_operand.vmem [shape: f32[128,1], index: 7, kind: output, shape index: {2}]
  %s8 = inlined_call_operand.hbm [shape: f32[1,128], index: 8, kind: output, shape index: {3}]
  %9 = xla_tuple %s5, %s6, %s7, %s8
  %s10 = sld [smem:[#allocation0]]
  $region54: #{tpu_custom_call.1} parent=0
    _
  %s12 = ssub.s32 1, %s10
  %s13 = scalar_select 0, %s12, %s10
  $region1: #{tpu_custom_call.1} parent=0
    #allocation2 [shape = 'u8[32768]{0}', space=vmem, size = 0x8000, scoped, tag = 'output window, operand 0, single buffered']
    #allocation3 [shape = 's32[1]{0}', space=sflag, size = 0x4, scoped, tag = 'scoped memory for tpu_custom_call.1']
    #allocation4 [shape = 'u8[65536]{0}', space=vmem, size = 0x10000, scoped, tag = 'output window, operand 1, single buffered']
    #allocation5 [shape = 's32[1]{0}', space=sflag, size = 0x4, scoped, tag = 'scoped memory for tpu_custom_call.1']
    #allocation6 [shape = 'u8[512]{0}', space=vmem, size = 0x400, scoped, tag = 'output window, operand 3, single buffered']
    %14 = vsyncpa [#allocation3], 0
    %15 = vsyncpa [#allocation5], 0
    // Predicated region
    $region2: #{tpu_custom_call.1} parent=1 // pred_check
      _
    $region3: #{tpu_custom_call.1} parent=1 // pred_check_branch
      %17 = sbr.rel (0) target = $region5
    $region4: #{tpu_custom_call.1} parent=1 // pred_region
      _
    $region5: #{tpu_custom_call.1} parent=1 // pred_fallthru
      _
    // Predicated region
    $region6: #{tpu_custom_call.1} parent=1 // pred_check
      _
    $region7: #{tpu_custom_call.1} parent=1 // pred_check_branch
      %19 = sbr.rel (0) target = $region9
    $region8: #{tpu_custom_call.1} parent=1 // pred_region
      _
    $region9: #{tpu_custom_call.1} parent=1 // pred_fallthru
      _
    // Predicated region
    $region10: #{tpu_custom_call.1} parent=1 // pred_check
      _
    $region11: #{tpu_custom_call.1} parent=1 // pred_check_branch
      %21 = sbr.rel (0) target = $region13
    $region12: #{tpu_custom_call.1} parent=1 // pred_region
      _
    $region13: #{tpu_custom_call.1} parent=1 // pred_fallthru
      _
    // Predicated region
    $region14: #{tpu_custom_call.1} parent=1 // pred_check
      _
    $region15: #{tpu_custom_call.1} parent=1 // pred_check_branch
      %23 = sbr.rel (0) target = $region17
    $region16: #{tpu_custom_call.1} parent=1 // pred_region
      _
    $region17: #{tpu_custom_call.1} parent=1 // pred_fallthru
      _
    // Predicated region
    $region18: #{tpu_custom_call.1} parent=1 // pred_check
      _
    $region19: #{tpu_custom_call.1} parent=1 // pred_check_branch
      %25 = sbr.rel (0) target = $region21
    $region20: #{tpu_custom_call.1} parent=1 // pred_region
      _
    $region21: #{tpu_custom_call.1} parent=1 // pred_fallthru
      _
    %v26 = vld [vmem:[%s0] sm:$0xff]
    %v27 = vld [vmem:[%s0 + $0x8] sm:$0xff]
    %v28 = vld [vmem:[%s0 + $0x10] sm:$0xff]
    %v29 = vld [vmem:[%s0 + $0x18] sm:$0xff]
    %v30 = vld [vmem:[%s0 + $0x20] sm:$0xff]
    %v31 = vld [vmem:[%s0 + $0x28] sm:$0xff]
    %v32 = vld [vmem:[%s0 + $0x30] sm:$0xff]
    %v33 = vld [vmem:[%s0 + $0x38] sm:$0xff]
    %v34 = vld [vmem:[%s0 + $0x40] sm:$0xff]
    %v35 = vld [vmem:[%s0 + $0x48] sm:$0xff]
    %v36 = vld [vmem:[%s0 + $0x50] sm:$0xff]
    %v37 = vld [vmem:[%s0 + $0x58] sm:$0xff]
    %v38 = vld [vmem:[%s0 + $0x60] sm:$0xff]
    %v39 = vld [vmem:[%s0 + $0x68] sm:$0xff]
    %v40 = vld [vmem:[%s0 + $0x70] sm:$0xff]
    %v41 = vld [vmem:[%s0 + $0x78] sm:$0xff]
    %v42 = vld [vmem:[%s1] sm:$0xff]
    %v43 = vld [vmem:[%s1 + $0x8] sm:$0xff]
    %vm44 = vcmask 64512
    %v46 = vsel %vm44, %v26, 0
    %v49 = vsel %vm44, %v27, 0
    %v52 = vsel %vm44, %v28, 0
    %v55 = vsel %vm44, %v29, 0
    %v58 = vsel %vm44, %v30, 0
    %v61 = vsel %vm44, %v31, 0
    %v64 = vsel %vm44, %v32, 0
    %v67 = vsel %vm44, %v33, 0
    %v70 = vsel %vm44, %v34, 0
    %v73 = vsel %vm44, %v35, 0
    %v76 = vsel %vm44, %v36, 0
    %v79 = vsel %vm44, %v37, 0
    %v82 = vsel %vm44, %v38, 0
    %v85 = vsel %vm44, %v39, 0
    %v88 = vsel %vm44, %v40, 0
    %v91 = vsel %vm44, %v41, 0
    %93 = vmatprep.subr.mxu0 %v43
    %94 = vmatpush1.msra.mxu0 %v42
    %95 = vmatprep.subr.mxu0 0.0
    %96 = vmatpush1.msra.mxu0 0.0
    %97 = vmatprep.subr.mxu0 0.0
    %98 = vmatpush1.msra.mxu0 0.0
    %99 = vmatprep.subr.mxu0 0.0
    %100 = vmatpush1.msra.mxu0 0.0
    %101 = vmatprep.subr.mxu0 0.0
    %102 = vmatpush1.msra.mxu0 0.0
    %103 = vmatprep.subr.mxu0 0.0
    %104 = vmatpush1.msra.mxu0 0.0
    %105 = vmatprep.subr.mxu0 0.0
    %106 = vmatpush1.msra.mxu0 0.0
    %107 = vmatprep.subr.mxu0 0.0
    %108 = vmatpush1.msra.mxu0 0.0
    %109 = vmatprep.subr.mxu0 0.0
    %110 = vmatpush1.msra.mxu0 0.0
    %111 = vmatprep.subr.mxu0 0.0
    %112 = vmatpush1.msra.mxu0 0.0
    %113 = vmatprep.subr.mxu0 0.0
    %114 = vmatpush1.msra.mxu0 0.0
    %115 = vmatprep.subr.mxu0 0.0
    %116 = vmatpush1.msra.mxu0 0.0
    %117 = vmatprep.subr.mxu0 0.0
    %118 = vmatpush1.msra.mxu0 0.0
    %119 = vmatprep.subr.mxu0 0.0
    %120 = vmatpush1.msra.mxu0 0.0
    %121 = vmatprep.subr.mxu0 0.0
    %122 = vmatpush1.msra.mxu0 0.0
    %123 = vmatprep.subr.mxu0 0.0
    %124 = vmatpush1.msra.mxu0 0.0
    %125 = vmatprep.subr.mxu0 0.0
    %126 = vmatpush1.msra.mxu0 0.0
    %127 = vmatprep.subr.mxu0 0.0
    %128 = vmatpush1.msra.mxu0 0.0
    %129 = vmatprep.subr.mxu0 0.0
    %130 = vmatpush1.msra.mxu0 0.0
    %131 = vmatprep.subr.mxu0 0.0
    %132 = vmatpush1.msra.mxu0 0.0
    %133 = vmatprep.subr.mxu0 0.0
    %134 = vmatpush1.msra.mxu0 0.0
    %135 = vmatprep.subr.mxu0 0.0
    %136 = vmatpush1.msra.mxu0 0.0
    %137 = vmatprep.subr.mxu0 0.0
    %138 = vmatpush1.msra.mxu0 0.0
    %139 = vmatprep.subr.mxu0 0.0
    %140 = vmatpush1.msra.mxu0 0.0
    %141 = vmatprep.subr.mxu0 0.0
    %142 = vmatpush1.msra.mxu0 0.0
    %143 = vmatprep.subr.mxu0 0.0
    %144 = vmatpush1.msra.mxu0 0.0
    %145 = vmatprep.subr.mxu0 0.0
    %146 = vmatpush1.msra.mxu0 0.0
    %147 = vmatprep.subr.mxu0 0.0
    %148 = vmatpush1.msra.mxu0 0.0
    %149 = vmatprep.subr.mxu0 0.0
    %150 = vmatpush1.msra.mxu0 0.0
    %151 = vmatprep.subr.mxu0 0.0
    %152 = vmatpush1.msra.mxu0 0.0
    %153 = vmatprep.subr.mxu0 0.0
    %154 = vmatpush1.msra.mxu0 0.0
    %155 = vmatprep.subr.mxu0 0.0
    %156 = vmatpush1.msra.mxu0 0.0
    %157 = vmatprep.mubr.f32.mxu0 0.0
    %158 = vmatmul.mubr.f32.gmra.mrb[0].mxu0 %v46
    %v159 = vpop.f32.mrb[0].mxu0
    %v160 = vadd.f32 0.0, %v159
    %v161 = vpop.f32.mrb[0].mxu0
    %v162 = vadd.f32 0.0, %v161
    %163 = vmatprep.mubr.f32.mxu0 0.0
    %164 = vmatmul.mubr.f32.gmra.mrb[0].mxu0 %v49
    %v165 = vpop.f32.mrb[0].mxu0
    %v166 = vadd.f32 0.0, %v165
    %v167 = vpop.f32.mrb[0].mxu0
    %v168 = vadd.f32 0.0, %v167
    %169 = vmatprep.mubr.f32.mxu0 0.0
    %170 = vmatmul.mubr.f32.gmra.mrb[0].mxu0 %v52
    %v171 = vpop.f32.mrb[0].mxu0
    %v172 = vadd.f32 0.0, %v171
    %v173 = vpop.f32.mrb[0].mxu0
    %v174 = vadd.f32 0.0, %v173
    %175 = vmatprep.mubr.f32.mxu0 0.0
    %176 = vmatmul.mubr.f32.gmra.mrb[0].mxu0 %v55
    %v177 = vpop.f32.mrb[0].mxu0
    %v178 = vadd.f32 0.0, %v177
    %v179 = vpop.f32.mrb[0].mxu0
    %v180 = vadd.f32 0.0, %v179
    %181 = vmatprep.mubr.f32.mxu0 0.0
    %182 = vmatmul.mubr.f32.gmra.mrb[0].mxu0 %v58
    %v183 = vpop.f32.mrb[0].mxu0
    %v184 = vadd.f32 0.0, %v183
    %v185 = vpop.f32.mrb[0].mxu0
    %v186 = vadd.f32 0.0, %v185
    %187 = vmatprep.mubr.f32.mxu0 0.0
    %188 = vmatmul.mubr.f32.gmra.mrb[0].mxu0 %v61
    %v189 = vpop.f32.mrb[0].mxu0
    %v190 = vadd.f32 0.0, %v189
    %v191 = vpop.f32.mrb[0].mxu0
    %v192 = vadd.f32 0.0, %v191
    %193 = vmatprep.mubr.f32.mxu0 0.0
    %194 = vmatmul.mubr.f32.gmra.mrb[0].mxu0 %v64
    %v195 = vpop.f32.mrb[0].mxu0
    %v196 = vadd.f32 0.0, %v195
    %v197 = vpop.f32.mrb[0].mxu0
    %v198 = vadd.f32 0.0, %v197
    %199 = vmatprep.mubr.f32.mxu0 0.0
    %200 = vmatmul.mubr.f32.gmra.mrb[0].mxu0 %v67
    %v201 = vpop.f32.mrb[0].mxu0
    %v202 = vadd.f32 0.0, %v201
    %v203 = vpop.f32.mrb[0].mxu0
    %v204 = vadd.f32 0.0, %v203
    %205 = vmatprep.mubr.f32.mxu0 0.0
    %206 = vmatmul.mubr.f32.gmra.mrb[0].mxu0 %v70
    %v207 = vpop.f32.mrb[0].mxu0
    %v208 = vadd.f32 0.0, %v207
    %v209 = vpop.f32.mrb[0].mxu0
    %v210 = vadd.f32 0.0, %v209
    %211 = vmatprep.mubr.f32.mxu0 0.0
    %212 = vmatmul.mubr.f32.gmra.mrb[0].mxu0 %v73
    %v213 = vpop.f32.mrb[0].mxu0
    %v214 = vadd.f32 0.0, %v213
    %v215 = vpop.f32.mrb[0].mxu0
    %v216 = vadd.f32 0.0, %v215
    %217 = vmatprep.mubr.f32.mxu0 0.0
    %218 = vmatmul.mubr.f32.gmra.mrb[0].mxu0 %v76
    %v219 = vpop.f32.mrb[0].mxu0
    %v220 = vadd.f32 0.0, %v219
    %v221 = vpop.f32.mrb[0].mxu0
    %v222 = vadd.f32 0.0, %v221
    %223 = vmatprep.mubr.f32.mxu0 0.0
    %224 = vmatmul.mubr.f32.gmra.mrb[0].mxu0 %v79
    %v225 = vpop.f32.mrb[0].mxu0
    %v226 = vadd.f32 0.0, %v225
    %v227 = vpop.f32.mrb[0].mxu0
    %v228 = vadd.f32 0.0, %v227
    %229 = vmatprep.mubr.f32.mxu0 0.0
    %230 = vmatmul.mubr.f32.gmra.mrb[0].mxu0 %v82
    %v231 = vpop.f32.mrb[0].mxu0
    %v232 = vadd.f32 0.0, %v231
    %v233 = vpop.f32.mrb[0].mxu0
    %v234 = vadd.f32 0.0, %v233
    %235 = vmatprep.mubr.f32.mxu0 0.0
    %236 = vmatmul.mubr.f32.gmra.mrb[0].mxu0 %v85
    %v237 = vpop.f32.mrb[0].mxu0
    %v238 = vadd.f32 0.0, %v237
    %v239 = vpop.f32.mrb[0].mxu0
    %v240 = vadd.f32 0.0, %v239
    %241 = vmatprep.mubr.f32.mxu0 0.0
    %242 = vmatmul.mubr.f32.gmra.mrb[0].mxu0 %v88
    %v243 = vpop.f32.mrb[0].mxu0
    %v244 = vadd.f32 0.0, %v243
    %v245 = vpop.f32.mrb[0].mxu0
    %v246 = vadd.f32 0.0, %v245
    %247 = vmatprep.mubr.f32.mxu0 0.0
    %248 = vmatmul.mubr.f32.gmra.mrb[0].mxu0 %v91
    %v249 = vpop.f32.mrb[0].mxu0
    %v250 = vadd.f32 0.0, %v249
    %v251 = vpop.f32.mrb[0].mxu0
    %v252 = vadd.f32 0.0, %v251
    %253 = vdwg.mxu0
    %vm254 = vcmp.gt.f32.partialorder %v160, 0.0
    %vm255 = vcmp.gt.f32.partialorder %v166, 0.0
    %vm256 = vcmp.gt.f32.partialorder %v172, 0.0
    %vm257 = vcmp.gt.f32.partialorder %v178, 0.0
    %vm258 = vcmp.gt.f32.partialorder %v184, 0.0
    %vm259 = vcmp.gt.f32.partialorder %v190, 0.0
    %vm260 = vcmp.gt.f32.partialorder %v196, 0.0
    %vm261 = vcmp.gt.f32.partialorder %v202, 0.0
    %vm262 = vcmp.gt.f32.partialorder %v208, 0.0
    %vm263 = vcmp.gt.f32.partialorder %v214, 0.0
    %vm264 = vcmp.gt.f32.partialorder %v220, 0.0
    %vm265 = vcmp.gt.f32.partialorder %v226, 0.0
    %vm266 = vcmp.gt.f32.partialorder %v232, 0.0
    %vm267 = vcmp.gt.f32.partialorder %v238, 0.0
    %vm268 = vcmp.gt.f32.partialorder %v244, 0.0
    %vm269 = vcmp.gt.f32.partialorder %v250, 0.0
    %v270 = vmul.f32 %v160, 0.2
    %v271 = vmul.f32 %v166, 0.2
    %v272 = vmul.f32 %v172, 0.2
    %v273 = vmul.f32 %v178, 0.2
    %v274 = vmul.f32 %v184, 0.2
    %v275 = vmul.f32 %v190, 0.2
    %v276 = vmul.f32 %v196, 0.2
    %v277 = vmul.f32 %v202, 0.2
    %v278 = vmul.f32 %v208, 0.2
    %v279 = vmul.f32 %v214, 0.2
    %v280 = vmul.f32 %v220, 0.2
    %v281 = vmul.f32 %v226, 0.2
    %v282 = vmul.f32 %v232, 0.2
    %v283 = vmul.f32 %v238, 0.2
    %v284 = vmul.f32 %v244, 0.2
    %v285 = vmul.f32 %v250, 0.2
    %v286 = vsel %vm254, %v160, %v270
    %v287 = vsel %vm255, %v166, %v271
    %v288 = vsel %vm256, %v172, %v272
    %v289 = vsel %vm257, %v178, %v273
    %v290 = vsel %vm258, %v184, %v274
    %v291 = vsel %vm259, %v190, %v275
    %v292 = vsel %vm260, %v196, %v276
    %v293 = vsel %vm261, %v202, %v277
    %v294 = vsel %vm262, %v208, %v278
    %v295 = vsel %vm263, %v214, %v279
    %v296 = vsel %vm264, %v220, %v280
    %v297 = vsel %vm265, %v226, %v281
    %v298 = vsel %vm266, %v232, %v282
    %v299 = vsel %vm267, %v238, %v283
    %v300 = vsel %vm268, %v244, %v284
    %v301 = vsel %vm269, %v250, %v285
    %v302 = vpack.c.bf16 %v287, %v286
    %v303 = vpack.c.bf16 %v289, %v288
    %v304 = vpack.c.bf16 %v291, %v290
    %v305 = vpack.c.bf16 %v293, %v292
    %v306 = vpack.c.bf16 %v295, %v294
    %v307 = vpack.c.bf16 %v297, %v296
    %v308 = vpack.c.bf16 %v299, %v298
    %v309 = vpack.c.bf16 %v301, %v300
    %v318 = vunpack.c.l.b16 %v302
    %v319 = vunpack.c.h.b16 %v302
    %v320 = vunpack.c.l.b16 %v303
    %v321 = vunpack.c.h.b16 %v303
    %v322 = vunpack.c.l.b16 %v304
    %v323 = vunpack.c.h.b16 %v304
    %v324 = vunpack.c.l.b16 %v305
    %v325 = vunpack.c.h.b16 %v305
    %v326 = vunpack.c.l.b16 %v306
    %v327 = vunpack.c.h.b16 %v306
    %v328 = vunpack.c.l.b16 %v307
    %v329 = vunpack.c.h.b16 %v307
    %v330 = vunpack.c.l.b16 %v308
    %v331 = vunpack.c.h.b16 %v308
    %v332 = vunpack.c.l.b16 %v309
    %v333 = vunpack.c.h.b16 %v309
    %v334 = vpack.c.b16 %v318, %v318
    %v335 = vpack.c.b16 %v319, %v319
    %v336 = vpack.c.b16 %v320, %v320
    %v337 = vpack.c.b16 %v321, %v321
    %v338 = vpack.c.b16 %v322, %v322
    %v339 = vpack.c.b16 %v323, %v323
    %v340 = vpack.c.b16 %v324, %v324
    %v341 = vpack.c.b16 %v325, %v325
    %v342 = vpack.c.b16 %v326, %v326
    %v343 = vpack.c.b16 %v327, %v327
    %v344 = vpack.c.b16 %v328, %v328
    %v345 = vpack.c.b16 %v329, %v329
    %v346 = vpack.c.b16 %v330, %v330
    %v347 = vpack.c.b16 %v331, %v331
    %v348 = vpack.c.b16 %v332, %v332
    %v349 = vpack.c.b16 %v333, %v333
    %366 = vst [vmem:[#allocation2] sm:$0xf] %v334
    %367 = vst [vmem:[#allocation2 + $0x4] sm:$0xf] %v335
    %368 = vst [vmem:[#allocation2 + $0x8] sm:$0xf] %v336
    %369 = vst [vmem:[#allocation2 + $0xc] sm:$0xf] %v337
    %370 = vst [vmem:[#allocation2 + $0x10] sm:$0xf] %v338
    %371 = vst [vmem:[#allocation2 + $0x14] sm:$0xf] %v339
    %372 = vst [vmem:[#allocation2 + $0x18] sm:$0xf] %v340
    %373 = vst [vmem:[#allocation2 + $0x1c] sm:$0xf] %v341
    %374 = vst [vmem:[#allocation2 + $0x20] sm:$0xf] %v342
    %375 = vst [vmem:[#allocation2 + $0x24] sm:$0xf] %v343
    %376 = vst [vmem:[#allocation2 + $0x28] sm:$0xf] %v344
    %377 = vst [vmem:[#allocation2 + $0x2c] sm:$0xf] %v345
    %378 = vst [vmem:[#allocation2 + $0x30] sm:$0xf] %v346
    %379 = vst [vmem:[#allocation2 + $0x34] sm:$0xf] %v347
    %380 = vst [vmem:[#allocation2 + $0x38] sm:$0xf] %v348
    %381 = vst [vmem:[#allocation2 + $0x3c] sm:$0xf] %v349
    %v382 = vld [vmem:[%s4] sm:$0x1]
    %v384 = vlaneseq
    %v385 = vshrl.u32 %v384, 7
    %v386 = vsub.s32 0, %v385
    %v387 = vrot.slane %v382, %v386
    %v389 = vadd.f32 %v162, %v387
    %v390 = vadd.f32 %v168, %v387
    %v391 = vadd.f32 %v174, %v387
    %v392 = vadd.f32 %v180, %v387
    %v393 = vadd.f32 %v186, %v387
    %v394 = vadd.f32 %v192, %v387
    %v395 = vadd.f32 %v198, %v387
    %v396 = vadd.f32 %v204, %v387
    %v397 = vadd.f32 %v210, %v387
    %v398 = vadd.f32 %v216, %v387
    %v399 = vadd.f32 %v222, %v387
    %v400 = vadd.f32 %v228, %v387
    %v401 = vadd.f32 %v234, %v387
    %v402 = vadd.f32 %v240, %v387
    %v403 = vadd.f32 %v246, %v387
    %v404 = vadd.f32 %v252, %v387
    %405 = vst [vmem:[#allocation4] sm:$0xff] %v389
    %406 = vst [vmem:[#allocation4 + $0x8] sm:$0xff] %v390
    %407 = vst [vmem:[#allocation4 + $0x10] sm:$0xff] %v391
    %408 = vst [vmem:[#allocation4 + $0x18] sm:$0xff] %v392
    %409 = vst [vmem:[#allocation4 + $0x20] sm:$0xff] %v393
    %410 = vst [vmem:[#allocation4 + $0x28] sm:$0xff] %v394
    %411 = vst [vmem:[#allocation4 + $0x30] sm:$0xff] %v395
    %412 = vst [vmem:[#allocation4 + $0x38] sm:$0xff] %v396
    %413 = vst [vmem:[#allocation4 + $0x40] sm:$0xff] %v397
    %414 = vst [vmem:[#allocation4 + $0x48] sm:$0xff] %v398
    %415 = vst [vmem:[#allocation4 + $0x50] sm:$0xff] %v399
    %416 = vst [vmem:[#allocation4 + $0x58] sm:$0xff] %v400
    %417 = vst [vmem:[#allocation4 + $0x60] sm:$0xff] %v401
    %418 = vst [vmem:[#allocation4 + $0x68] sm:$0xff] %v402
    %419 = vst [vmem:[#allocation4 + $0x70] sm:$0xff] %v403
    %420 = vst [vmem:[#allocation4 + $0x78] sm:$0xff] %v404
    %v421 = vld [vmem:[%s2] sm:$0xff]
    %v422 = vld [vmem:[%s2 + $0x8] sm:$0xff]
    %v423 = vld [vmem:[%s2 + $0x10] sm:$0xff]
    %v424 = vld [vmem:[%s2 + $0x18] sm:$0xff]
    %v425 = vld [vmem:[%s2 + $0x20] sm:$0xff]
    %v426 = vld [vmem:[%s2 + $0x28] sm:$0xff]
    %v427 = vld [vmem:[%s2 + $0x30] sm:$0xff]
    %v428 = vld [vmem:[%s2 + $0x38] sm:$0xff]
    %v429 = vld [vmem:[%s2 + $0x40] sm:$0xff]
    %v430 = vld [vmem:[%s2 + $0x48] sm:$0xff]
    %v431 = vld [vmem:[%s2 + $0x50] sm:$0xff]
    %v432 = vld [vmem:[%s2 + $0x58] sm:$0xff]
    %v433 = vld [vmem:[%s2 + $0x60] sm:$0xff]
    %v434 = vld [vmem:[%s2 + $0x68] sm:$0xff]
    %v435 = vld [vmem:[%s2 + $0x70] sm:$0xff]
    %v436 = vld [vmem:[%s2 + $0x78] sm:$0xff]
    %437 = vmatprep.subr.mxu0 0.0
    %438 = vmatpush1.msra.mxu0 %v421
    %439 = vmatprep.subr.mxu0 0.0
    %440 = vmatpush1.msra.mxu0 %v422
    %441 = vmatprep.subr.mxu0 0.0
    %442 = vmatpush1.msra.mxu0 %v423
    %443 = vmatprep.subr.mxu0 0.0
    %444 = vmatpush1.msra.mxu0 %v424
    %445 = vmatprep.subr.mxu0 0.0
    %446 = vmatpush1.msra.mxu0 %v425
    %447 = vmatprep.subr.mxu0 0.0
    %448 = vmatpush1.msra.mxu0 %v426
    %449 = vmatprep.subr.mxu0 0.0
    %450 = vmatpush1.msra.mxu0 %v427
    %451 = vmatprep.subr.mxu0 0.0
    %452 = vmatpush1.msra.mxu0 %v428
    %453 = vmatprep.subr.mxu0 0.0
    %454 = vmatpush1.msra.mxu0 %v429
    %455 = vmatprep.subr.mxu0 0.0
    %456 = vmatpush1.msra.mxu0 %v430
    %457 = vmatprep.subr.mxu0 0.0
    %458 = vmatpush1.msra.mxu0 %v431
    %459 = vmatprep.subr.mxu0 0.0
    %460 = vmatpush1.msra.mxu0 %v432
    %461 = vmatprep.subr.mxu0 0.0
    %462 = vmatpush1.msra.mxu0 %v433
    %463 = vmatprep.subr.mxu0 0.0
    %464 = vmatpush1.msra.mxu0 %v434
    %465 = vmatprep.subr.mxu0 0.0
    %466 = vmatpush1.msra.mxu0 %v435
    %467 = vmatprep.subr.mxu0 0.0
    %468 = vmatpush1.msra.mxu0 %v436
    %469 = vmatprep.subr.mxu0 0.0
    %470 = vmatpush1.msra.mxu0 0.0
    %471 = vmatprep.subr.mxu0 0.0
    %472 = vmatpush1.msra.mxu0 0.0
    %473 = vmatprep.subr.mxu0 0.0
    %474 = vmatpush1.msra.mxu0 0.0
    %475 = vmatprep.subr.mxu0 0.0
    %476 = vmatpush1.msra.mxu0 0.0
    %477 = vmatprep.subr.mxu0 0.0
    %478 = vmatpush1.msra.mxu0 0.0
    %479 = vmatprep.subr.mxu0 0.0
    %480 = vmatpush1.msra.mxu0 0.0
    %481 = vmatprep.subr.mxu0 0.0
    %482 = vmatpush1.msra.mxu0 0.0
    %483 = vmatprep.subr.mxu0 0.0
    %484 = vmatpush1.msra.mxu0 0.0
    %485 = vmatprep.subr.mxu0 0.0
    %486 = vmatpush1.msra.mxu0 0.0
    %487 = vmatprep.subr.mxu0 0.0
    %488 = vmatpush1.msra.mxu0 0.0
    %489 = vmatprep.subr.mxu0 0.0
    %490 = vmatpush1.msra.mxu0 0.0
    %491 = vmatprep.subr.mxu0 0.0
    %492 = vmatpush1.msra.mxu0 0.0
    %493 = vmatprep.subr.mxu0 0.0
    %494 = vmatpush1.msra.mxu0 0.0
    %495 = vmatprep.subr.mxu0 0.0
    %496 = vmatpush1.msra.mxu0 0.0
    %497 = vmatprep.subr.mxu0 0.0
    %498 = vmatpush1.msra.mxu0 0.0
    %499 = vmatprep.subr.mxu0 0.0
    %500 = vmatpush1.msra.mxu0 0.0
    %501 = vmatprep.mubr.f32.mxu0 0.0
    %502 = vmatmul.mubr.f32.gmra.mrb[0].mxu0 %v286
    %v503 = vpop.f32.mrb[0].mxu0
    %v504 = vadd.f32 0.0, %v503
    %v505 = vpop.f32.mrb[0].mxu0
    %506 = vmatprep.mubr.f32.mxu0 0.0
    %507 = vmatmul.mubr.f32.gmra.mrb[0].mxu0 %v287
    %v508 = vpop.f32.mrb[0].mxu0
    %v509 = vadd.f32 0.0, %v508
    %v510 = vpop.f32.mrb[0].mxu0
    %511 = vmatprep.mubr.f32.mxu0 0.0
    %512 = vmatmul.mubr.f32.gmra.mrb[0].mxu0 %v288
    %v513 = vpop.f32.mrb[0].mxu0
    %v514 = vadd.f32 0.0, %v513
    %v515 = vpop.f32.mrb[0].mxu0
    %516 = vmatprep.mubr.f32.mxu0 0.0
    %517 = vmatmul.mubr.f32.gmra.mrb[0].mxu0 %v289
    %v518 = vpop.f32.mrb[0].mxu0
    %v519 = vadd.f32 0.0, %v518
    %v520 = vpop.f32.mrb[0].mxu0
    %521 = vmatprep.mubr.f32.mxu0 0.0
    %522 = vmatmul.mubr.f32.gmra.mrb[0].mxu0 %v290
    %v523 = vpop.f32.mrb[0].mxu0
    %v524 = vadd.f32 0.0, %v523
    %v525 = vpop.f32.mrb[0].mxu0
    %526 = vmatprep.mubr.f32.mxu0 0.0
    %527 = vmatmul.mubr.f32.gmra.mrb[0].mxu0 %v291
    %v528 = vpop.f32.mrb[0].mxu0
    %v529 = vadd.f32 0.0, %v528
    %v530 = vpop.f32.mrb[0].mxu0
    %531 = vmatprep.mubr.f32.mxu0 0.0
    %532 = vmatmul.mubr.f32.gmra.mrb[0].mxu0 %v292
    %v533 = vpop.f32.mrb[0].mxu0
    %v534 = vadd.f32 0.0, %v533
    %v535 = vpop.f32.mrb[0].mxu0
    %536 = vmatprep.mubr.f32.mxu0 0.0
    %537 = vmatmul.mubr.f32.gmra.mrb[0].mxu0 %v293
    %v538 = vpop.f32.mrb[0].mxu0
    %v539 = vadd.f32 0.0, %v538
    %v540 = vpop.f32.mrb[0].mxu0
    %541 = vmatprep.mubr.f32.mxu0 0.0
    %542 = vmatmul.mubr.f32.gmra.mrb[0].mxu0 %v294
    %v543 = vpop.f32.mrb[0].mxu0
    %v544 = vadd.f32 0.0, %v543
    %v545 = vpop.f32.mrb[0].mxu0
    %546 = vmatprep.mubr.f32.mxu0 0.0
    %547 = vmatmul.mubr.f32.gmra.mrb[0].mxu0 %v295
    %v548 = vpop.f32.mrb[0].mxu0
    %v549 = vadd.f32 0.0, %v548
    %v550 = vpop.f32.mrb[0].mxu0
    %551 = vmatprep.mubr.f32.mxu0 0.0
    %552 = vmatmul.mubr.f32.gmra.mrb[0].mxu0 %v296
    %v553 = vpop.f32.mrb[0].mxu0
    %v554 = vadd.f32 0.0, %v553
    %v555 = vpop.f32.mrb[0].mxu0
    %556 = vmatprep.mubr.f32.mxu0 0.0
    %557 = vmatmul.mubr.f32.gmra.mrb[0].mxu0 %v297
    %v558 = vpop.f32.mrb[0].mxu0
    %v559 = vadd.f32 0.0, %v558
    %v560 = vpop.f32.mrb[0].mxu0
    %561 = vmatprep.mubr.f32.mxu0 0.0
    %562 = vmatmul.mubr.f32.gmra.mrb[0].mxu0 %v298
    %v563 = vpop.f32.mrb[0].mxu0
    %v564 = vadd.f32 0.0, %v563
    %v565 = vpop.f32.mrb[0].mxu0
    %566 = vmatprep.mubr.f32.mxu0 0.0
    %567 = vmatmul.mubr.f32.gmra.mrb[0].mxu0 %v299
    %v568 = vpop.f32.mrb[0].mxu0
    %v569 = vadd.f32 0.0, %v568
    %v570 = vpop.f32.mrb[0].mxu0
    %571 = vmatprep.mubr.f32.mxu0 0.0
    %572 = vmatmul.mubr.f32.gmra.mrb[0].mxu0 %v300
    %v573 = vpop.f32.mrb[0].mxu0
    %v574 = vadd.f32 0.0, %v573
    %v575 = vpop.f32.mrb[0].mxu0
    %576 = vmatprep.mubr.f32.mxu0 0.0
    %577 = vmatmul.mubr.f32.gmra.mrb[0].mxu0 %v301
    %v578 = vpop.f32.mrb[0].mxu0
    %v579 = vadd.f32 0.0, %v578
    %v580 = vpop.f32.mrb[0].mxu0
    %581 = vdwg.mxu0
    %vm582 = vcmask 7168
    %583 = vst.msk [vmem:[%s7] sm:$0xff] %vm582, %v504
    %584 = vst.msk [vmem:[%s7 + $0x8] sm:$0xff] %vm582, %v509
    %585 = vst.msk [vmem:[%s7 + $0x10] sm:$0xff] %vm582, %v514
    %586 = vst.msk [vmem:[%s7 + $0x18] sm:$0xff] %vm582, %v519
    %587 = vst.msk [vmem:[%s7 + $0x20] sm:$0xff] %vm582, %v524
    %588 = vst.msk [vmem:[%s7 + $0x28] sm:$0xff] %vm582, %v529
    %589 = vst.msk [vmem:[%s7 + $0x30] sm:$0xff] %vm582, %v534
    %590 = vst.msk [vmem:[%s7 + $0x38] sm:$0xff] %vm582, %v539
    %591 = vst.msk [vmem:[%s7 + $0x40] sm:$0xff] %vm582, %v544
    %592 = vst.msk [vmem:[%s7 + $0x48] sm:$0xff] %vm582, %v549
    %593 = vst.msk [vmem:[%s7 + $0x50] sm:$0xff] %vm582, %v554
    %594 = vst.msk [vmem:[%s7 + $0x58] sm:$0xff] %vm582, %v559
    %595 = vst.msk [vmem:[%s7 + $0x60] sm:$0xff] %vm582, %v564
    %596 = vst.msk [vmem:[%s7 + $0x68] sm:$0xff] %vm582, %v569
    %597 = vst.msk [vmem:[%s7 + $0x70] sm:$0xff] %vm582, %v574
    %598 = vst.msk [vmem:[%s7 + $0x78] sm:$0xff] %vm582, %v579
    %v599 = vld [vmem:[%s3] sm:$0x1]
    %600 = vmatprep.subr.mxu0 0.0
    %601 = vmatpush1.xpose.msra.mxu0 %v286
    %602 = vmatprep.subr.mxu0 0.0
    %603 = vmatpush1.xpose.msra.mxu0 %v287
    %604 = vmatprep.subr.mxu0 0.0
    %605 = vmatpush1.xpose.msra.mxu0 %v288
    %606 = vmatprep.subr.mxu0 0.0
    %607 = vmatpush1.xpose.msra.mxu0 %v289
    %608 = vmatprep.subr.mxu0 0.0
    %609 = vmatpush1.xpose.msra.mxu0 %v290
    %610 = vmatprep.subr.mxu0 0.0
    %611 = vmatpush1.xpose.msra.mxu0 %v291
    %612 = vmatprep.subr.mxu0 0.0
    %613 = vmatpush1.xpose.msra.mxu0 %v292
    %614 = vmatprep.subr.mxu0 0.0
    %615 = vmatpush1.xpose.msra.mxu0 %v293
    %616 = vmatprep.subr.mxu0 0.0
    %617 = vmatpush1.xpose.msra.mxu0 %v294
    %618 = vmatprep.subr.mxu0 0.0
    %619 = vmatpush1.xpose.msra.mxu0 %v295
    %620 = vmatprep.subr.mxu0 0.0
    %621 = vmatpush1.xpose.msra.mxu0 %v296
    %622 = vmatprep.subr.mxu0 0.0
    %623 = vmatpush1.xpose.msra.mxu0 %v297
    %624 = vmatprep.subr.mxu0 0.0
    %625 = vmatpush1.xpose.msra.mxu0 %v298
    %626 = vmatprep.subr.mxu0 0.0
    %627 = vmatpush1.xpose.msra.mxu0 %v299
    %628 = vmatprep.subr.mxu0 0.0
    %629 = vmatpush1.xpose.msra.mxu0 %v300
    %630 = vmatprep.subr.mxu0 0.0
    %631 = vmatpush1.xpose.msra.mxu0 %v301
    %632 = vmatprep.subr.mxu0 0.0
    %633 = vmatpush1.xpose.msra.mxu0 0.0
    %634 = vmatprep.subr.mxu0 0.0
    %635 = vmatpush1.xpose.msra.mxu0 0.0
    %636 = vmatprep.subr.mxu0 0.0
    %637 = vmatpush1.xpose.msra.mxu0 0.0
    %638 = vmatprep.subr.mxu0 0.0
    %639 = vmatpush1.xpose.msra.mxu0 0.0
    %640 = vmatprep.subr.mxu0 0.0
    %641 = vmatpush1.xpose.msra.mxu0 0.0
    %642 = vmatprep.subr.mxu0 0.0
    %643 = vmatpush1.xpose.msra.mxu0 0.0
    %644 = vmatprep.subr.mxu0 0.0
    %645 = vmatpush1.xpose.msra.mxu0 0.0
    %646 = vmatprep.subr.mxu0 0.0
    %647 = vmatpush1.xpose.msra.mxu0 0.0
    %648 = vmatprep.subr.mxu0 0.0
    %649 = vmatpush1.xpose.msra.mxu0 0.0
    %650 = vmatprep.subr.mxu0 0.0
    %651 = vmatpush1.xpose.msra.mxu0 0.0
    %652 = vmatprep.subr.mxu0 0.0
    %653 = vmatpush1.xpose.msra.mxu0 0.0
    %654 = vmatprep.subr.mxu0 0.0
    %655 = vmatpush1.xpose.msra.mxu0 0.0
    %656 = vmatprep.subr.mxu0 0.0
    %657 = vmatpush1.xpose.msra.mxu0 0.0
    %658 = vmatprep.subr.mxu0 0.0
    %659 = vmatpush1.xpose.msra.mxu0 0.0
    %660 = vmatprep.subr.mxu0 0.0
    %661 = vmatpush1.xpose.msra.mxu0 0.0
    %662 = vmatprep.subr.mxu0 0.0
    %663 = vmatpush1.xpose.msra.mxu0 0.0
    %664 = vmatprep.mubr.f32.mxu0 0.0
    %665 = vmatmul.mubr.f32.gmra.mrb[0].mxu0 %v599
    %v666 = vpop.f32.mrb[0].mxu0
    %v667 = vadd.f32 0.0, %v666
    %v668 = vpop.f32.mrb[0].mxu0
    %669 = vdwg.mxu0
    %670 = vst [vmem:[#allocation6] sm:$0x1] %v667
    // Predicated region
    $region22: #{tpu_custom_call.1} parent=1 // pred_check
      _
    $region23: #{tpu_custom_call.1} parent=1 // pred_check_branch
      %672 = sbr.rel (0) target = $region25
    $region24: #{tpu_custom_call.1} parent=1 // pred_region
      %s674 = ssub.s32 1024, 1024
      %675 = vsyncadd [#allocation3], %s674
      %s676 = sshll.u32 [#allocation2], 4
      %s677 = int_to_ptr.vmem [resolvable:$true] %s676
      %682 = dma.vmem_to_hbm [thread:$0]  %s677, 1024, %s5, [#allocation3], 64, 64, 4
    $region25: #{tpu_custom_call.1} parent=1 // pred_fallthru
      _
    // Predicated region
    $region26: #{tpu_custom_call.1} parent=1 // pred_check
      _
    $region27: #{tpu_custom_call.1} parent=1 // pred_check_branch
      %684 = sbr.rel (0) target = $region29
    $region28: #{tpu_custom_call.1} parent=1 // pred_region
      %s686 = ssub.s32 2048, 2048
      %687 = vsyncadd [#allocation5], %s686
      %s688 = sshll.u32 [#allocation4], 4
      %s689 = int_to_ptr.vmem [resolvable:$true] %s688
      %694 = dma.vmem_to_hbm [thread:$0]  %s689, 2048, %s6, [#allocation5], 128, 128, 8
    $region29: #{tpu_custom_call.1} parent=1 // pred_fallthru
      _
    // Predicated region
    $region30: #{tpu_custom_call.1} parent=1 // pred_check
      _
    $region31: #{tpu_custom_call.1} parent=1 // pred_check_branch
      %696 = sbr.rel (0) target = $region33
    $region32: #{tpu_custom_call.1} parent=1 // pred_region
      _
    $region33: #{tpu_custom_call.1} parent=1 // pred_fallthru
      _
    // Predicated region
    $region34: #{tpu_custom_call.1} parent=1 // pred_check
      _
    $region35: #{tpu_custom_call.1} parent=1 // pred_check_branch
      %698 = sbr.rel (0) target = $region37
    $region36: #{tpu_custom_call.1} parent=1 // pred_region
      %s700 = ssub.s32 16, 16
      %701 = vsyncadd [#allocation5], %s700
      %s703 = sshll.u32 [#allocation6], 4
      %s704 = int_to_ptr.vmem [resolvable:$true] %s703
      %706 = dma.vmem_to_hbm [thread:$0]  %s704, 16, %s8, [#allocation5]
    $region37: #{tpu_custom_call.1} parent=1 // pred_fallthru
      _
    // Predicated region
    $region38: #{tpu_custom_call.1} parent=1 // pred_check
      _
    $region39: #{tpu_custom_call.1} parent=1 // pred_check_branch
      %708 = sbr.rel (0) target = $region41
    $region40: #{tpu_custom_call.1} parent=1 // pred_region
      %709 = dma.done [#allocation3], 1024
    $region41: #{tpu_custom_call.1} parent=1 // pred_fallthru
      _
    // Predicated region
    $region42: #{tpu_custom_call.1} parent=1 // pred_check
      _
    $region43: #{tpu_custom_call.1} parent=1 // pred_check_branch
      %711 = sbr.rel (0) target = $region45
    $region44: #{tpu_custom_call.1} parent=1 // pred_region
      %712 = dma.done [#allocation5], 2048
    $region45: #{tpu_custom_call.1} parent=1 // pred_fallthru
      _
    // Predicated region
    $region46: #{tpu_custom_call.1} parent=1 // pred_check
      _
    $region47: #{tpu_custom_call.1} parent=1 // pred_check_branch
      %714 = sbr.rel (0) target = $region49
    $region48: #{tpu_custom_call.1} parent=1 // pred_region
      _
    $region49: #{tpu_custom_call.1} parent=1 // pred_fallthru
      _
    // Predicated region
    $region50: #{tpu_custom_call.1} parent=1 // pred_check
      _
    $region51: #{tpu_custom_call.1} parent=1 // pred_check_branch
      %716 = sbr.rel (0) target = $region53
    $region52: #{tpu_custom_call.1} parent=1 // pred_region
      %717 = dma.done [#allocation5], 16
    $region53: #{tpu_custom_call.1} parent=1 // pred_fallthru
      _
    %718 = vsyncpa [#allocation3], 1
    %719 = vsyncpa [#allocation5], 1

</llo_original>
